<compile_context>
chip_gen: v7x
topology: tpu7x:2x2x1
jax: 0.10.0
libtpu: 0.0.40
codegen_flags: <defaults>
</compile_context>

<pallas_src>
import jax
import jax.numpy as jnp
from jax import lax
from jax.experimental import pallas as pl
from jax.experimental.pallas import tpu as pltpu


def _round_up(x, m):
    return (x + m - 1) // m * m


def _choose_tm(n, tm):
    """Pick the batch (lane) tile: multiple of 128, big enough to amortize
    per-step overhead, small enough that large batches still get >= 2 grid
    steps (so v7x can shard the 'parallel' axis across its 2 TensorCores)."""
    tm = max(128, _round_up(tm, 128))
    n128 = _round_up(max(n, 1), 128)
    tm = min(tm, n128)
    if n128 >= 2 * 128 and pl.cdiv(n128, tm) < 2:
        # Batch fits in one tile but is large enough to split in two.
        tm = _round_up(pl.cdiv(n128, 2), 128)
    return tm


def _mlp_t_kernel(x_ref, w1_ref, b1_ref, w2_ref, b2_ref, oT_ref):
    # x_ref: [tm, in_size] (natural layout), w1: [hidden, in_size].
    # Contract both on their last (in_size) axis -> h: [hidden, tm].
    # Mosaic handles the needed operand transpose on the XLU (has slack).
    h = lax.dot_general(
        w1_ref[...], x_ref[...],
        dimension_numbers=(((1,), (1,)), ((), ())),
        preferred_element_type=jnp.float32,
    )
    h = jnp.maximum(h + b1_ref[...], 0.0)          # b1: [hidden, 1] lane-bcast

    # Layer 2: [out, hidden] @ [hidden, tm] -> [out, tm]; h stays f32
    # (no downcast round trip between the two matmuls).
    y = jnp.dot(w2_ref[...], h, preferred_element_type=jnp.float32)
    y = jnp.maximum(y + b2_ref[...], 0.0)          # b2: [out, 1]

    oT_ref[...] = y.astype(oT_ref.dtype)


def output_layer_forward(x, w1, b1, w2, b2, *, tm=8192, return_transposed=False):
    """Forward pass of `output_layer`.

    x : [N, in_size]
    w1: [64, in_size]     (PyTorch nn.Linear layout: [out, in])
    b1: [64]
    w2: [out_size, 64]
    b2: [out_size]
    returns [N, out_size]   (or [out_size, N] if return_transposed=True)
    """
    n, in_size = x.shape
    hidden = w1.shape[0]
    out_size = w2.shape[0]

    tm = _choose_tm(n, tm)
    grid = (pl.cdiv(n, tm),)

    b1c = b1.reshape(hidden, 1)
    b2c = b2.reshape(out_size, 1)

    itemsize = x.dtype.itemsize
    w_itemsize = w1.dtype.itemsize
    cost = pl.CostEstimate(
        flops=2 * n * (in_size * hidden + hidden * out_size),
        transcendentals=0,
        bytes_accessed=(x.size * itemsize
                        + (w1.size + b1.size + w2.size + b2.size) * w_itemsize
                        + n * out_size * itemsize),
    )

    yT = pl.pallas_call(
        _mlp_t_kernel,
        out_shape=jax.ShapeDtypeStruct((out_size, n), x.dtype),
        grid=grid,
        in_specs=[
            # x batch tile in natural [N, in_size] layout: pipelined /
            # double-buffered across grid steps; ragged last block OK.
            pl.BlockSpec((tm, in_size), lambda i: (i, 0)),
            # Weights & biases: constant index_map -> DMA'd once, stay
            # VMEM-resident across the grid (full-dim blocks satisfy the
            # (8,128) rule).
            pl.BlockSpec((hidden, in_size), lambda i: (0, 0)),
            pl.BlockSpec((hidden, 1), lambda i: (0, 0)),
            pl.BlockSpec((out_size, hidden), lambda i: (0, 0)),
            pl.BlockSpec((out_size, 1), lambda i: (0, 0)),
        ],
        # Lane-dense output blocks: batch on the 128-lane axis.
        out_specs=pl.BlockSpec((out_size, tm), lambda i: (0, i)),
        compiler_params=pltpu.CompilerParams(
            dimension_semantics=("parallel",),     # v7x: shard tiles over 2 TCs
        ),
        cost_estimate=cost,
    )(x, w1, b1c, w2, b2c)

    if return_transposed:
        return yT                                  # [out_size, N], no extra pass
    return yT.T                                    # module layout [N, out_size]


def init_params(key, in_size, out_size, hidden=64, dtype=jnp.float32):
    """PyTorch nn.Linear default init: U(-1/sqrt(fan_in), 1/sqrt(fan_in));
    weights kept in native [out, in] layout."""
    k1, k2, k3, k4 = jax.random.split(key, 4)
    bound1 = 1.0 / (in_size ** 0.5)
    bound2 = 1.0 / (hidden ** 0.5)
    w1 = jax.random.uniform(k1, (hidden, in_size), dtype, -bound1, bound1)
    b1 = jax.random.uniform(k2, (hidden,), dtype, -bound1, bound1)
    w2 = jax.random.uniform(k3, (out_size, hidden), dtype, -bound2, bound2)
    b2 = jax.random.uniform(k4, (out_size,), dtype, -bound2, bound2)
    return w1, b1, w2, b2


def _ref(x, w1, b1, w2, b2):
    h = jnp.maximum(x @ w1.T + b1, 0.0)
    return jnp.maximum(h @ w2.T + b2, 0.0)


if __name__ == "__main__":
    key = jax.random.PRNGKey(0)
    kx, kp, kx2, kx3 = jax.random.split(key, 4)

    IN_SIZE, OUT_SIZE = 32, 16
    w1, b1, w2, b2 = init_params(kp, IN_SIZE, OUT_SIZE)

    # Small case consistent with the module (batch=8): single ragged block.
    x = jax.random.normal(kx, (8, IN_SIZE), jnp.float32)
    out = jax.block_until_ready(output_layer_forward(x, w1, b1, w2, b2))
    assert out.shape == (8, OUT_SIZE)
    assert jnp.allclose(out, _ref(x, w1, b1, w2, b2), atol=1e-5, rtol=1e-5)

    # Multi-tile case: grid > 1 with a ragged last block (no whole-array pad).
    x2 = jax.random.normal(kx2, (300, IN_SIZE), jnp.float32)
    out2 = jax.block_until_ready(
        output_layer_forward(x2, w1, b1, w2, b2, tm=128))
    assert out2.shape == (300, OUT_SIZE)
    assert jnp.allclose(out2, _ref(x2, w1, b1, w2, b2), atol=1e-5, rtol=1e-5)

    # Default-tm case: exercises the automatic tile selection / >=2-step split
    # path and the transposed-output option.
    x3 = jax.random.normal(kx3, (1000, IN_SIZE), jnp.float32)
    out3 = jax.block_until_ready(
        output_layer_forward(x3, w1, b1, w2, b2, return_transposed=True))
    assert out3.shape == (OUT_SIZE, 1000)
    assert jnp.allclose(out3.T, _ref(x3, w1, b1, w2, b2), atol=1e-5, rtol=1e-5)

    print("KERNEL_OK")
</pallas_src>

<mosaic_0001>
module attributes {stable_mosaic.version = 11 : i64} {
  func.func @_mlp_t_kernel(%arg0: i32, %arg1: memref<128x32xf32, #tpu.memory_space<vmem>>, %arg2: memref<64x32xf32, #tpu.memory_space<vmem>>, %arg3: memref<64x1xf32, #tpu.memory_space<vmem>>, %arg4: memref<16x64xf32, #tpu.memory_space<vmem>>, %arg5: memref<16x1xf32, #tpu.memory_space<vmem>>, %arg6: memref<16x128xf32, #tpu.memory_space<vmem>>) attributes {dimension_semantics = [#tpu.dimension_semantics<parallel>], iteration_bounds = array<i64: 1>, scalar_prefetch = 0 : i64, scratch_operands = 0 : i64, tpu.core_type = #tpu.core_type<tc>, window_params = [{transform_indices = @transform_0, window_bounds = array<i64: 128, 32>}, {pipeline_mode = #tpu.pipeline_mode<synchronous>, transform_indices = @transform_1, window_bounds = array<i64: 64, 32>}, {pipeline_mode = #tpu.pipeline_mode<synchronous>, transform_indices = @transform_2, window_bounds = array<i64: 64, 1>}, {pipeline_mode = #tpu.pipeline_mode<synchronous>, transform_indices = @transform_3, window_bounds = array<i64: 16, 64>}, {pipeline_mode = #tpu.pipeline_mode<synchronous>, transform_indices = @transform_4, window_bounds = array<i64: 16, 1>}, {transform_indices = @transform_5, window_bounds = array<i64: 16, 128>}]} {
    %c0 = arith.constant 0 : index
    %c0_0 = arith.constant 0 : index
    %0 = vector.load %arg2[%c0, %c0_0] : memref<64x32xf32, #tpu.memory_space<vmem>>, vector<64x32xf32>
    %c0_1 = arith.constant 0 : index
    %c0_2 = arith.constant 0 : index
    %1 = vector.load %arg1[%c0_1, %c0_2] : memref<128x32xf32, #tpu.memory_space<vmem>>, vector<128x32xf32>
    %cst = arith.constant dense<0.000000e+00> : vector<64x128xf32>
    %2 = tpu.matmul %0, %1, %cst {dimension_numbers = #tpu.dot_dimension_numbers<[1], [1], [0], [0], [0, 0, 1, 0], [], []>} : vector<64x32xf32>, vector<128x32xf32>, vector<64x128xf32> -> vector<64x128xf32>
    %c0_3 = arith.constant 0 : index
    %c0_4 = arith.constant 0 : index
    %3 = vector.load %arg3[%c0_3, %c0_4] : memref<64x1xf32, #tpu.memory_space<vmem>>, vector<64x1xf32>
    %4 = vector.broadcast %3 : vector<64x1xf32> to vector<64x128xf32>
    %5 = arith.addf %2, %4 : vector<64x128xf32>
    %cst_5 = arith.constant 0.000000e+00 : f32
    %6 = vector.broadcast %cst_5 : f32 to vector<64x128xf32>
    %7 = arith.maximumf %5, %6 : vector<64x128xf32>
    %c0_6 = arith.constant 0 : index
    %c0_7 = arith.constant 0 : index
    %8 = vector.load %arg4[%c0_6, %c0_7] : memref<16x64xf32, #tpu.memory_space<vmem>>, vector<16x64xf32>
    %cst_8 = arith.constant dense<0.000000e+00> : vector<16x128xf32>
    %9 = tpu.matmul %8, %7, %cst_8 {dimension_numbers = #tpu.dot_dimension_numbers<[1], [0], [0], [1], [0, 0, 1, 1], [], []>} : vector<16x64xf32>, vector<64x128xf32>, vector<16x128xf32> -> vector<16x128xf32>
    %c0_9 = arith.constant 0 : index
    %c0_10 = arith.constant 0 : index
    %10 = vector.load %arg5[%c0_9, %c0_10] : memref<16x1xf32, #tpu.memory_space<vmem>>, vector<16x1xf32>
    %11 = vector.broadcast %10 : vector<16x1xf32> to vector<16x128xf32>
    %12 = arith.addf %9, %11 : vector<16x128xf32>
    %cst_11 = arith.constant 0.000000e+00 : f32
    %13 = vector.broadcast %cst_11 : f32 to vector<16x128xf32>
    %14 = arith.maximumf %12, %13 : vector<16x128xf32>
    %c0_12 = arith.constant 0 : index
    %c0_13 = arith.constant 0 : index
    %15 = vector.load %arg6[%c0_12, %c0_13] : memref<16x128xf32, #tpu.memory_space<vmem>>, vector<16x128xf32>
    tpu.vector_store %arg6[%c0_12, %c0_13], %14 {strides = array<i32>} : memref<16x128xf32, #tpu.memory_space<vmem>>, vector<16x128xf32>,
    return
  }
  func.func @transform_0(%arg0: i32) -> (i32, i32) {
    %c0_i32 = arith.constant 0 : i32
    %c0_i32_0 = arith.constant 0 : i32
    return %arg0, %c0_i32 : i32, i32
  }
  func.func @transform_1(%arg0: i32) -> (i32, i32) {
    %c0_i32 = arith.constant 0 : i32
    %c0_i32_0 = arith.constant 0 : i32
    %c0_i32_1 = arith.constant 0 : i32
    return %c0_i32, %c0_i32_0 : i32, i32
  }
  func.func @transform_2(%arg0: i32) -> (i32, i32) {
    %c0_i32 = arith.constant 0 : i32
    %c0_i32_0 = arith.constant 0 : i32
    %c0_i32_1 = arith.constant 0 : i32
    return %c0_i32, %c0_i32_0 : i32, i32
  }
  func.func @transform_3(%arg0: i32) -> (i32, i32) {
    %c0_i32 = arith.constant 0 : i32
    %c0_i32_0 = arith.constant 0 : i32
    %c0_i32_1 = arith.constant 0 : i32
    return %c0_i32, %c0_i32_0 : i32, i32
  }
  func.func @transform_4(%arg0: i32) -> (i32, i32) {
    %c0_i32 = arith.constant 0 : i32
    %c0_i32_0 = arith.constant 0 : i32
    %c0_i32_1 = arith.constant 0 : i32
    return %c0_i32, %c0_i32_0 : i32, i32
  }
  func.func @transform_5(%arg0: i32) -> (i32, i32) {
    %c0_i32 = arith.constant 0 : i32
    %c0_i32_0 = arith.constant 0 : i32
    return %c0_i32, %arg0 : i32, i32
  }
}

</mosaic_0001>

<llo_original>
// kernel: tpu_custom_call.1
$region0: #{tpu_custom_call.1}
  #allocation0 [shape = 'u32[]', space=smem, size = 0x4, offset = 0x4, fixed_abs, tag = 'smem constant byte address 0x4 - core index']
  #allocation1 [shape = 'u32[144,128]{1,0:T(1,128)}', space=vmem, size = 0x12000, scoped, tag = 'internal scratch']
  %s0 = inlined_call_operand.vmem [shape: f32[8,32], index: 0, kind: input, shape index: {}]
  %s1 = inlined_call_operand.vmem [shape: f32[64,32], index: 1, kind: input, shape index: {}]
  %s2 = inlined_call_operand.vmem [shape: f32[64,1], index: 2, kind: input, shape index: {}]
  %s3 = inlined_call_operand.vmem [shape: f32[16,64], index: 3, kind: input, shape index: {}]
  %s4 = inlined_call_operand.vmem [shape: f32[16,1], index: 4, kind: input, shape index: {}]
  %s5 = inlined_call_operand.vmem [shape: f32[16,8], index: 5, kind: output, shape index: {}]
  %s6 = sld [smem:[#allocation0]]
  $region30: #{tpu_custom_call.1} parent=0
    _
  %s8 = ssub.s32 1, %s6
  %s9 = scalar_select 0, %s8, %s6
  // Predicated region
  $region2: #{tpu_custom_call.1} parent=0 // pred_check
    _
  $region3: #{tpu_custom_call.1} parent=0 // pred_check_branch
    %11 = sbr.rel (0) target = $region5
  $region4: #{tpu_custom_call.1} parent=0 // pred_region
    _
  $region5: #{tpu_custom_call.1} parent=0 // pred_fallthru
    _
  // Predicated region
  $region6: #{tpu_custom_call.1} parent=0 // pred_check
    _
  $region7: #{tpu_custom_call.1} parent=0 // pred_check_branch
    %13 = sbr.rel (0) target = $region9
  $region8: #{tpu_custom_call.1} parent=0 // pred_region
    _
  $region9: #{tpu_custom_call.1} parent=0 // pred_fallthru
    _
  // Predicated region
  $region10: #{tpu_custom_call.1} parent=0 // pred_check
    _
  $region11: #{tpu_custom_call.1} parent=0 // pred_check_branch
    %15 = sbr.rel (0) target = $region13
  $region12: #{tpu_custom_call.1} parent=0 // pred_region
    _
  $region13: #{tpu_custom_call.1} parent=0 // pred_fallthru
    _
  // Predicated region
  $region14: #{tpu_custom_call.1} parent=0 // pred_check
    _
  $region15: #{tpu_custom_call.1} parent=0 // pred_check_branch
    %17 = sbr.rel (0) target = $region17
  $region16: #{tpu_custom_call.1} parent=0 // pred_region
    _
  $region17: #{tpu_custom_call.1} parent=0 // pred_fallthru
    _
  // Predicated region
  $region18: #{tpu_custom_call.1} parent=0 // pred_check
    _
  $region19: #{tpu_custom_call.1} parent=0 // pred_check_branch
    %19 = sbr.rel (0) target = $region21
  $region20: #{tpu_custom_call.1} parent=0 // pred_region
    _
  $region21: #{tpu_custom_call.1} parent=0 // pred_fallthru
    _
  %v20 = vld [vmem:[%s1] sm:$0xff]
  %v21 = vld [vmem:[%s1 + $0x8] sm:$0xff]
  %v22 = vld [vmem:[%s1 + $0x10] sm:$0xff]
  %v23 = vld [vmem:[%s1 + $0x18] sm:$0xff]
  %v24 = vld [vmem:[%s1 + $0x20] sm:$0xff]
  %v25 = vld [vmem:[%s1 + $0x28] sm:$0xff]
  %v26 = vld [vmem:[%s1 + $0x30] sm:$0xff]
  %v27 = vld [vmem:[%s1 + $0x38] sm:$0xff]
  %v28 = vld [vmem:[%s0] sm:$0xff]
  %v29 = vld [vmem:[%s0 + $0x8] sm:$0xff]
  %v30 = vld [vmem:[%s0 + $0x10] sm:$0xff]
  %v31 = vld [vmem:[%s0 + $0x18] sm:$0xff]
  %v32 = vld [vmem:[%s0 + $0x20] sm:$0xff]
  %v33 = vld [vmem:[%s0 + $0x28] sm:$0xff]
  %v34 = vld [vmem:[%s0 + $0x30] sm:$0xff]
  %v35 = vld [vmem:[%s0 + $0x38] sm:$0xff]
  %v36 = vld [vmem:[%s0 + $0x40] sm:$0xff]
  %v37 = vld [vmem:[%s0 + $0x48] sm:$0xff]
  %v38 = vld [vmem:[%s0 + $0x50] sm:$0xff]
  %v39 = vld [vmem:[%s0 + $0x58] sm:$0xff]
  %v40 = vld [vmem:[%s0 + $0x60] sm:$0xff]
  %v41 = vld [vmem:[%s0 + $0x68] sm:$0xff]
  %v42 = vld [vmem:[%s0 + $0x70] sm:$0xff]
  %v43 = vld [vmem:[%s0 + $0x78] sm:$0xff]
  %v44 = vld [vmem:[%s2] sm:$0xff]
  %v45 = vld [vmem:[%s2 + $0x8] sm:$0xff]
  %v46 = vld [vmem:[%s2 + $0x10] sm:$0xff]
  %v47 = vld [vmem:[%s2 + $0x18] sm:$0xff]
  %v48 = vld [vmem:[%s2 + $0x20] sm:$0xff]
  %v49 = vld [vmem:[%s2 + $0x28] sm:$0xff]
  %v50 = vld [vmem:[%s2 + $0x30] sm:$0xff]
  %v51 = vld [vmem:[%s2 + $0x38] sm:$0xff]
  %53 = vset.pattern.permute.xlu0 0
  %54 = vperm.xlu0 %53, %v44
  %v55 = vpop.permute.xlu0 %54
  %58 = vset.pattern.permute.xlu0 0
  %59 = vperm.xlu0 %58, %v45
  %v60 = vpop.permute.xlu0 %59
  %63 = vset.pattern.permute.xlu0 0
  %64 = vperm.xlu0 %63, %v46
  %v65 = vpop.permute.xlu0 %64
  %68 = vset.pattern.permute.xlu0 0
  %69 = vperm.xlu0 %68, %v47
  %v70 = vpop.permute.xlu0 %69
  %73 = vset.pattern.permute.xlu0 0
  %74 = vperm.xlu0 %73, %v48
  %v75 = vpop.permute.xlu0 %74
  %78 = vset.pattern.permute.xlu0 0
  %79 = vperm.xlu0 %78, %v49
  %v80 = vpop.permute.xlu0 %79
  %83 = vset.pattern.permute.xlu0 0
  %84 = vperm.xlu0 %83, %v50
  %v85 = vpop.permute.xlu0 %84
  %88 = vset.pattern.permute.xlu0 0
  %89 = vperm.xlu0 %88, %v51
  %v90 = vpop.permute.xlu0 %89
  %vm92 = vcmask 261120
  %v94 = vsel %vm92, %v20, 0
  %v97 = vsel %vm92, %v21, 0
  %v100 = vsel %vm92, %v22, 0
  %v103 = vsel %vm92, %v23, 0
  %v106 = vsel %vm92, %v24, 0
  %v109 = vsel %vm92, %v25, 0
  %v112 = vsel %vm92, %v26, 0
  %v115 = vsel %vm92, %v27, 0
  %v118 = vsel %vm92, %v28, 0
  %v121 = vsel %vm92, %v29, 0
  %v124 = vsel %vm92, %v30, 0
  %v127 = vsel %vm92, %v31, 0
  %v130 = vsel %vm92, %v32, 0
  %v133 = vsel %vm92, %v33, 0
  %v136 = vsel %vm92, %v34, 0
  %v139 = vsel %vm92, %v35, 0
  %v142 = vsel %vm92, %v36, 0
  %v145 = vsel %vm92, %v37, 0
  %v148 = vsel %vm92, %v38, 0
  %v151 = vsel %vm92, %v39, 0
  %v154 = vsel %vm92, %v40, 0
  %v157 = vsel %vm92, %v41, 0
  %v160 = vsel %vm92, %v42, 0
  %v163 = vsel %vm92, %v43, 0
  %165 = vmatprep.subr.mxu0 0.0
  %166 = vmatpush1.xpose.msra.mxu0 %v118
  %167 = vmatprep.subr.mxu0 0.0
  %168 = vmatpush1.xpose.msra.mxu0 %v121
  %169 = vmatprep.subr.mxu0 0.0
  %170 = vmatpush1.xpose.msra.mxu0 %v124
  %171 = vmatprep.subr.mxu0 0.0
  %172 = vmatpush1.xpose.msra.mxu0 %v127
  %173 = vmatprep.subr.mxu0 0.0
  %174 = vmatpush1.xpose.msra.mxu0 %v130
  %175 = vmatprep.subr.mxu0 0.0
  %176 = vmatpush1.xpose.msra.mxu0 %v133
  %177 = vmatprep.subr.mxu0 0.0
  %178 = vmatpush1.xpose.msra.mxu0 %v136
  %179 = vmatprep.subr.mxu0 0.0
  %180 = vmatpush1.xpose.msra.mxu0 %v139
  %181 = vmatprep.subr.mxu0 0.0
  %182 = vmatpush1.xpose.msra.mxu0 %v142
  %183 = vmatprep.subr.mxu0 0.0
  %184 = vmatpush1.xpose.msra.mxu0 %v145
  %185 = vmatprep.subr.mxu0 0.0
  %186 = vmatpush1.xpose.msra.mxu0 %v148
  %187 = vmatprep.subr.mxu0 0.0
  %188 = vmatpush1.xpose.msra.mxu0 %v151
  %189 = vmatprep.subr.mxu0 0.0
  %190 = vmatpush1.xpose.msra.mxu0 %v154
  %191 = vmatprep.subr.mxu0 0.0
  %192 = vmatpush1.xpose.msra.mxu0 %v157
  %193 = vmatprep.subr.mxu0 0.0
  %194 = vmatpush1.xpose.msra.mxu0 %v160
  %195 = vmatprep.subr.mxu0 0.0
  %196 = vmatpush1.xpose.msra.mxu0 %v163
  %197 = vmatprep.subr.mxu0 0.0
  %198 = vmatpush1.xpose.msra.mxu0 0.0
  %199 = vmatprep.subr.mxu0 0.0
  %200 = vmatpush1.xpose.msra.mxu0 0.0
  %201 = vmatprep.subr.mxu0 0.0
  %202 = vmatpush1.xpose.msra.mxu0 0.0
  %203 = vmatprep.subr.mxu0 0.0
  %204 = vmatpush1.xpose.msra.mxu0 0.0
  %205 = vmatprep.subr.mxu0 0.0
  %206 = vmatpush1.xpose.msra.mxu0 0.0
  %207 = vmatprep.subr.mxu0 0.0
  %208 = vmatpush1.xpose.msra.mxu0 0.0
  %209 = vmatprep.subr.mxu0 0.0
  %210 = vmatpush1.xpose.msra.mxu0 0.0
  %211 = vmatprep.subr.mxu0 0.0
  %212 = vmatpush1.xpose.msra.mxu0 0.0
  %213 = vmatprep.subr.mxu0 0.0
  %214 = vmatpush1.xpose.msra.mxu0 0.0
  %215 = vmatprep.subr.mxu0 0.0
  %216 = vmatpush1.xpose.msra.mxu0 0.0
  %217 = vmatprep.subr.mxu0 0.0
  %218 = vmatpush1.xpose.msra.mxu0 0.0
  %219 = vmatprep.subr.mxu0 0.0
  %220 = vmatpush1.xpose.msra.mxu0 0.0
  %221 = vmatprep.subr.mxu0 0.0
  %222 = vmatpush1.xpose.msra.mxu0 0.0
  %223 = vmatprep.subr.mxu0 0.0
  %224 = vmatpush1.xpose.msra.mxu0 0.0
  %225 = vmatprep.subr.mxu0 0.0
  %226 = vmatpush1.xpose.msra.mxu0 0.0
  %227 = vmatprep.subr.mxu0 0.0
  %228 = vmatpush1.xpose.msra.mxu0 0.0
  %229 = vmatprep.mubr.f32.mxu0 0.0
  %230 = vmatmul.mubr.f32.gmra.mrb[0].mxu0 %v94
  %v231 = vpop.f32.mrb[0].mxu0
  %v232 = vadd.f32 %v55, %v231
  %v233 = vpop.f32.mrb[0].mxu0
  %234 = vmatprep.mubr.f32.mxu0 0.0
  %235 = vmatmul.mubr.f32.gmra.mrb[0].mxu0 %v97
  %v236 = vpop.f32.mrb[0].mxu0
  %v237 = vadd.f32 %v60, %v236
  %v238 = vpop.f32.mrb[0].mxu0
  %239 = vmatprep.mubr.f32.mxu0 0.0
  %240 = vmatmul.mubr.f32.gmra.mrb[0].mxu0 %v100
  %v241 = vpop.f32.mrb[0].mxu0
  %v242 = vadd.f32 %v65, %v241
  %v243 = vpop.f32.mrb[0].mxu0
  %244 = vmatprep.mubr.f32.mxu0 0.0
  %245 = vmatmul.mubr.f32.gmra.mrb[0].mxu0 %v103
  %v246 = vpop.f32.mrb[0].mxu0
  %v247 = vadd.f32 %v70, %v246
  %v248 = vpop.f32.mrb[0].mxu0
  %249 = vmatprep.mubr.f32.mxu0 0.0
  %250 = vmatmul.mubr.f32.gmra.mrb[0].mxu0 %v106
  %v251 = vpop.f32.mrb[0].mxu0
  %v252 = vadd.f32 %v75, %v251
  %v253 = vpop.f32.mrb[0].mxu0
  %254 = vmatprep.mubr.f32.mxu0 0.0
  %255 = vmatmul.mubr.f32.gmra.mrb[0].mxu0 %v109
  %v256 = vpop.f32.mrb[0].mxu0
  %v257 = vadd.f32 %v80, %v256
  %v258 = vpop.f32.mrb[0].mxu0
  %259 = vmatprep.mubr.f32.mxu0 0.0
  %260 = vmatmul.mubr.f32.gmra.mrb[0].mxu0 %v112
  %v261 = vpop.f32.mrb[0].mxu0
  %v262 = vadd.f32 %v85, %v261
  %v263 = vpop.f32.mrb[0].mxu0
  %264 = vmatprep.mubr.f32.mxu0 0.0
  %265 = vmatmul.mubr.f32.gmra.mrb[0].mxu0 %v115
  %v266 = vpop.f32.mrb[0].mxu0
  %v267 = vadd.f32 %v90, %v266
  %v268 = vpop.f32.mrb[0].mxu0
  %269 = vdwg.mxu0
  %v270 = vmax.f32 %v232, 0.0
  %v271 = vmax.f32 %v237, 0.0
  %v272 = vmax.f32 %v242, 0.0
  %v273 = vmax.f32 %v247, 0.0
  %v274 = vmax.f32 %v252, 0.0
  %v275 = vmax.f32 %v257, 0.0
  %v276 = vmax.f32 %v262, 0.0
  %v277 = vmax.f32 %v267, 0.0
  %v278 = vld [vmem:[%s3] sm:$0xff]
  %v279 = vld [vmem:[%s3 + $0x8] sm:$0xff]
  %v280 = vld [vmem:[%s4] sm:$0xff]
  %v281 = vld [vmem:[%s4 + $0x8] sm:$0xff]
  %283 = vset.pattern.permute.xlu0 0
  %284 = vperm.xlu0 %283, %v280
  %v285 = vpop.permute.xlu0 %284
  %288 = vset.pattern.permute.xlu0 0
  %289 = vperm.xlu0 %288, %v281
  %v290 = vpop.permute.xlu0 %289
  %vm292 = vcmask 523264
  %v294 = vsel %vm292, %v278, 0
  %v297 = vsel %vm292, %v279, 0
  %299 = vmatprep.subr.mxu0 0.0
  %300 = vmatpush1.msra.mxu0 %v270
  %301 = vmatprep.subr.mxu0 0.0
  %302 = vmatpush1.msra.mxu0 %v271
  %303 = vmatprep.subr.mxu0 0.0
  %304 = vmatpush1.msra.mxu0 %v272
  %305 = vmatprep.subr.mxu0 0.0
  %306 = vmatpush1.msra.mxu0 %v273
  %307 = vmatprep.subr.mxu0 0.0
  %308 = vmatpush1.msra.mxu0 %v274
  %309 = vmatprep.subr.mxu0 0.0
  %310 = vmatpush1.msra.mxu0 %v275
  %311 = vmatprep.subr.mxu0 0.0
  %312 = vmatpush1.msra.mxu0 %v276
  %313 = vmatprep.subr.mxu0 0.0
  %314 = vmatpush1.msra.mxu0 %v277
  %315 = vmatprep.subr.mxu0 0.0
  %316 = vmatpush1.msra.mxu0 0.0
  %317 = vmatprep.subr.mxu0 0.0
  %318 = vmatpush1.msra.mxu0 0.0
  %319 = vmatprep.subr.mxu0 0.0
  %320 = vmatpush1.msra.mxu0 0.0
  %321 = vmatprep.subr.mxu0 0.0
  %322 = vmatpush1.msra.mxu0 0.0
  %323 = vmatprep.subr.mxu0 0.0
  %324 = vmatpush1.msra.mxu0 0.0
  %325 = vmatprep.subr.mxu0 0.0
  %326 = vmatpush1.msra.mxu0 0.0
  %327 = vmatprep.subr.mxu0 0.0
  %328 = vmatpush1.msra.mxu0 0.0
  %329 = vmatprep.subr.mxu0 0.0
  %330 = vmatpush1.msra.mxu0 0.0
  %331 = vmatprep.subr.mxu0 0.0
  %332 = vmatpush1.msra.mxu0 0.0
  %333 = vmatprep.subr.mxu0 0.0
  %334 = vmatpush1.msra.mxu0 0.0
  %335 = vmatprep.subr.mxu0 0.0
  %336 = vmatpush1.msra.mxu0 0.0
  %337 = vmatprep.subr.mxu0 0.0
  %338 = vmatpush1.msra.mxu0 0.0
  %339 = vmatprep.subr.mxu0 0.0
  %340 = vmatpush1.msra.mxu0 0.0
  %341 = vmatprep.subr.mxu0 0.0
  %342 = vmatpush1.msra.mxu0 0.0
  %343 = vmatprep.subr.mxu0 0.0
  %344 = vmatpush1.msra.mxu0 0.0
  %345 = vmatprep.subr.mxu0 0.0
  %346 = vmatpush1.msra.mxu0 0.0
  %347 = vmatprep.subr.mxu0 0.0
  %348 = vmatpush1.msra.mxu0 0.0
  %349 = vmatprep.subr.mxu0 0.0
  %350 = vmatpush1.msra.mxu0 0.0
  %351 = vmatprep.subr.mxu0 0.0
  %352 = vmatpush1.msra.mxu0 0.0
  %353 = vmatprep.subr.mxu0 0.0
  %354 = vmatpush1.msra.mxu0 0.0
  %355 = vmatprep.subr.mxu0 0.0
  %356 = vmatpush1.msra.mxu0 0.0
  %357 = vmatprep.subr.mxu0 0.0
  %358 = vmatpush1.msra.mxu0 0.0
  %359 = vmatprep.subr.mxu0 0.0
  %360 = vmatpush1.msra.mxu0 0.0
  %361 = vmatprep.subr.mxu0 0.0
  %362 = vmatpush1.msra.mxu0 0.0
  %363 = vmatprep.mubr.f32.mxu0 0.0
  %364 = vmatmul.mubr.f32.gmra.mrb[0].mxu0 %v294
  %v365 = vpop.f32.mrb[0].mxu0
  %v366 = vadd.f32 %v285, %v365
  %v367 = vpop.f32.mrb[0].mxu0
  %368 = vmatprep.mubr.f32.mxu0 0.0
  %369 = vmatmul.mubr.f32.gmra.mrb[0].mxu0 %v297
  %v370 = vpop.f32.mrb[0].mxu0
  %v371 = vadd.f32 %v290, %v370
  %v372 = vpop.f32.mrb[0].mxu0
  %373 = vdwg.mxu0
  %v374 = vmax.f32 %v366, 0.0
  %v375 = vmax.f32 %v371, 0.0
  %376 = vst [vmem:[%s5] sm:$0xff] %v374
  %377 = vst [vmem:[%s5 + $0x8] sm:$0xff] %v375
  // Predicated region
  $region22: #{tpu_custom_call.1} parent=0 // pred_check
    _
  $region23: #{tpu_custom_call.1} parent=0 // pred_check_branch
    %379 = sbr.rel (0) target = $region25
  $region24: #{tpu_custom_call.1} parent=0 // pred_region
    _
  $region25: #{tpu_custom_call.1} parent=0 // pred_fallthru
    _
  // Predicated region
  $region26: #{tpu_custom_call.1} parent=0 // pred_check
    _
  $region27: #{tpu_custom_call.1} parent=0 // pred_check_branch
    %381 = sbr.rel (0) target = $region29
  $region28: #{tpu_custom_call.1} parent=0 // pred_region
    _
  $region29: #{tpu_custom_call.1} parent=0 // pred_fallthru
    _

</llo_original>
